<compile_context>
chip_gen: v7x
topology: tpu7x:2x2x1
jax: 0.10.0
libtpu: 0.0.40
codegen_flags: <defaults>
</compile_context>

<pallas_src>
import functools

import jax
import jax.numpy as jnp
from jax import lax
from jax.experimental import pallas as pl
from jax.experimental.pallas import tpu as pltpu

EPS = 1e-12           # F.normalize default eps
SCHOOL_HIDDEN = 16    # nn.Linear(schools_size, 16)


def _round_up(n, m):
    return ((n + m - 1) // m) * m


def _skill_predictor_kernel(
    x_ref,        # (F, TB) bf16 — packed, transposed rows [school | college | combine]
    wfused_ref,   # (16+L1, F) bf16 — [school layer-1 rows (stats cols zeroed) ;
                  #                    prediction layer-1 stats rows (school cols zeroed)]
    bs1_ref,      # (16, 1) f32
    ws2_ref,      # (1, 16) f32 — school layer-2 weight
    wp1s_ref,     # (L1, 1) f32 — prediction layer-1 column for the school score
    bp1_ref,      # (L1, 1) f32
    wp2_ref,      # (1, L1) f32 — prediction layer-2 weight
    mask_ref,     # (F, 1) f32 — 0 on school rows, 1 on stats rows
    bs2_ref,      # (1, 1) f32 in SMEM
    bp2_ref,      # (1, 1) f32 in SMEM
    out_ref,      # (1, TB) f32 — lane-dense output block
    *, h_rows,
):
    f32 = jnp.float32
    xt = x_ref[...]                                                   # (F, TB) bf16

    # Fused bf16 MXU matmul: x streams through the MXU once for both consumers.
    z = jnp.dot(wfused_ref[...], xt, preferred_element_type=f32)      # (16+L1, TB) f32
    h = jnp.maximum(z[:h_rows, :] + bs1_ref[...], 0.0)                # (16, TB)
    pre_rest = z[h_rows:, :]                                          # (L1, TB)

    # school_model layer 2 -> per-sample score (lane-dense (1, TB)).
    score = jnp.dot(ws2_ref[...], h, preferred_element_type=f32) + bs2_ref[0, 0]
    score = jnp.maximum(score, 0.0)                                   # (1, TB)

    # F.normalize(cat([score, stats])): fold 1/max(||.||, eps) into layer 1.
    # Stats-only squared sum via the resident sublane mask (school rows zeroed).
    xf = xt.astype(f32)
    stats_sq = (xf * xf) * mask_ref[...]
    norm_sq = score * score + jnp.sum(stats_sq, axis=0, keepdims=True)  # (1, TB)
    # 1 / max(sqrt(ns), eps) == rsqrt(max(ns, eps^2)) — runs on the (free) EUP slot.
    inv_denom = lax.rsqrt(jnp.maximum(norm_sq, EPS * EPS))            # (1, TB)

    # prediction layer 1: score column is a broadcast multiply; stats part reuses z.
    pre = wp1s_ref[...] * score + pre_rest                            # (L1, TB)
    y = jnp.maximum(pre * inv_denom + bp1_ref[...], 0.0)              # (L1, TB)

    # prediction layer 2: plain (1, L1) @ (L1, TB) -> lane-dense (1, TB) output.
    out_ref[...] = (jnp.dot(wp2_ref[...], y, preferred_element_type=f32)
                    + bp2_ref[0, 0])


def pack_activations(school_encoding, college_stats, combine_stats):
    """Done once upstream (persist this layout in production): packed, transposed
    (F, B) bf16 activation stream the kernel consumes directly."""
    x = jnp.concatenate([school_encoding, college_stats, combine_stats], axis=-1)
    return x.T.astype(jnp.bfloat16)                                   # (F, B)


def skill_predictor_forward(x_t, params, *, block_rows=2048):
    """x_t: (F, B) bf16 packed/transposed activations (see pack_activations)."""
    feat, B = x_t.shape

    # Batch tile: multiple of 128 (lane-dense); when B > 128 force >=2 tiles so the
    # ("parallel",) grid axis can shard across v7x's two TensorCores. VMEM footprint
    # per double-buffered tile is tiny (tens of KiB) on every generation.
    if B > 128:
        tb = min(_round_up(block_rows, 128), _round_up(pl.cdiv(B, 2), 128))
    else:
        tb = _round_up(B, 128)
    b_pad = _round_up(B, tb)
    if b_pad != B:
        x_t = jnp.pad(x_t, ((0, 0), (0, b_pad - B)))  # zero lanes, sliced off below
    n_tiles = b_pad // tb

    def resident(a):  # weights: constant block index -> DMA'd once, stay in VMEM
        return pl.BlockSpec(a.shape, lambda i: (0,) * a.ndim)

    smem = pl.BlockSpec(memory_space=pltpu.MemorySpace.SMEM)  # (1,1) scalar biases

    kernel = functools.partial(_skill_predictor_kernel, h_rows=SCHOOL_HIDDEN)

    out = pl.pallas_call(
        kernel,
        out_shape=jax.ShapeDtypeStruct((1, b_pad), jnp.float32),
        grid=(n_tiles,),
        in_specs=[
            pl.BlockSpec((feat, tb), lambda i: (0, i)),     # activations: streamed tiles
            resident(params["w_fused"]),
            resident(params["bs1"]),
            resident(params["ws2"]),
            resident(params["wp1_score"]),
            resident(params["bp1"]),
            resident(params["wp2"]),
            resident(params["mask"]),
            smem,                                           # bs2
            smem,                                           # bp2
        ],
        out_specs=pl.BlockSpec((1, tb), lambda i: (0, i)),  # lane-dense output
        compiler_params=pltpu.CompilerParams(
            dimension_semantics=("parallel",),              # shard tiles across 2 TCs
        ),
    )(
        x_t,
        params["w_fused"], params["bs1"], params["ws2"],
        params["wp1_score"], params["bp1"], params["wp2"], params["mask"],
        params["bs2"], params["bp2"],
    )
    return out[0, :B].reshape(B, 1)


def init_params(key, schools_size, college_stats_size, combine_stats_size):
    """Deterministic synthetic parameters matching the nn.Module shapes, stored in the
    fused / transposed layout the kernel consumes (weights as (out, in))."""
    school_out = 1
    stats = college_stats_size + combine_stats_size
    main_input = stats + school_out
    layer1 = 2 * main_input // 3
    feat = schools_size + stats

    ks = jax.random.split(key, 4)

    def lin(k, fan_out, fan_in):
        kw, kb = jax.random.split(k)
        w = jax.random.normal(kw, (fan_out, fan_in), jnp.float32) * 0.1
        b = jax.random.normal(kb, (fan_out, 1), jnp.float32) * 0.1
        return w, b

    ws1, bs1 = lin(ks[0], SCHOOL_HIDDEN, schools_size)   # (16, S), (16, 1)
    ws2, bs2 = lin(ks[1], school_out, SCHOOL_HIDDEN)     # (1, 16), (1, 1)
    wp1, bp1 = lin(ks[2], layer1, main_input)            # (L1, 1+stats), (L1, 1)
    wp2, bp2 = lin(ks[3], 1, layer1)                     # (1, L1), (1, 1)

    # Fused (16+L1, F) weight over the packed [school | stats] feature axis.
    # Zero-padded column groups make the packed input feed both layers exactly.
    ws1_pad = jnp.concatenate([ws1, jnp.zeros((SCHOOL_HIDDEN, stats), jnp.float32)], axis=1)
    wp1_rest_pad = jnp.concatenate(
        [jnp.zeros((layer1, schools_size), jnp.float32), wp1[:, school_out:]], axis=1)
    w_fused = jnp.concatenate([ws1_pad, wp1_rest_pad], axis=0).astype(jnp.bfloat16)

    wp1_score = wp1[:, 0:school_out]                     # (L1, 1) — school-score column

    # Sublane mask selecting the stats rows of the packed (F, B) stream.
    mask = jnp.concatenate([jnp.zeros((schools_size, 1), jnp.float32),
                            jnp.ones((stats, 1), jnp.float32)], axis=0)      # (F, 1)

    return {
        "w_fused": w_fused, "bs1": bs1, "ws2": ws2, "bs2": bs2,
        "wp1_score": wp1_score, "bp1": bp1, "wp2": wp2, "bp2": bp2,
        "mask": mask,
    }


def reference_forward(school_encoding, college_stats, combine_stats, params, schools_size):
    """Pure-JAX reference mirroring the PyTorch forward (f32, highest precision),
    evaluated on the same bf16-rounded x-weights / inputs the kernel consumes."""
    hp = lax.Precision.HIGHEST
    f32 = jnp.float32
    wf = params["w_fused"].astype(f32)
    ws1 = wf[:SCHOOL_HIDDEN, :schools_size]                       # (16, S)
    wp1_rest = wf[SCHOOL_HIDDEN:, schools_size:]                  # (L1, stats)
    wp1 = jnp.concatenate([params["wp1_score"], wp1_rest], axis=1)

    h = jnp.maximum(jnp.dot(school_encoding, ws1.T, precision=hp) + params["bs1"].T, 0.0)
    score = jnp.maximum(
        jnp.dot(h, params["ws2"].T, precision=hp) + params["bs2"][0, 0], 0.0)
    x = jnp.concatenate([score, college_stats, combine_stats], axis=-1)
    norm = jnp.sqrt(jnp.sum(x * x, axis=-1, keepdims=True))
    x = x / jnp.maximum(norm, EPS)
    y = jnp.maximum(jnp.dot(x, wp1.T, precision=hp) + params["bp1"].T, 0.0)
    return jnp.dot(y, params["wp2"].T, precision=hp) + params["bp2"][0, 0]


if __name__ == "__main__":
    batch = 8
    schools_size = 12
    college_stats_size = 10
    combine_stats_size = 6

    key = jax.random.PRNGKey(0)
    k_params, k_school, k_college, k_combine = jax.random.split(key, 4)

    params = init_params(k_params, schools_size, college_stats_size, combine_stats_size)

    school_encoding = jax.random.normal(k_school, (batch, schools_size), jnp.float32)
    college_stats = jax.random.normal(k_college, (batch, college_stats_size), jnp.float32)
    combine_stats = jax.random.normal(k_combine, (batch, combine_stats_size), jnp.float32)

    # Pack once upstream (production callers would persist this layout).
    x_t = pack_activations(school_encoding, college_stats, combine_stats)

    out = skill_predictor_forward(x_t, params)
    out = jax.block_until_ready(out)

    # Reference uses the same bf16-rounded activations the kernel streams from HBM.
    rd = lambda a: a.astype(jnp.bfloat16).astype(jnp.float32)
    ref = reference_forward(rd(school_encoding), rd(college_stats), rd(combine_stats),
                            params, schools_size)

    assert out.shape == (batch, 1)
    assert jnp.allclose(out, ref, atol=1e-3, rtol=1e-3), (out, ref)
    print("KERNEL_OK")
</pallas_src>

<mosaic_0001>
module attributes {stable_mosaic.version = 11 : i64} {
  func.func @_skill_predictor_kernel(%arg0: i32, %arg1: memref<28x128xbf16, #tpu.memory_space<vmem>>, %arg2: memref<27x28xbf16, #tpu.memory_space<vmem>>, %arg3: memref<16x1xf32, #tpu.memory_space<vmem>>, %arg4: memref<1x16xf32, #tpu.memory_space<vmem>>, %arg5: memref<11x1xf32, #tpu.memory_space<vmem>>, %arg6: memref<11x1xf32, #tpu.memory_space<vmem>>, %arg7: memref<1x11xf32, #tpu.memory_space<vmem>>, %arg8: memref<28x1xf32, #tpu.memory_space<vmem>>, %arg9: memref<1x1xf32, #tpu.memory_space<smem>>, %arg10: memref<1x1xf32, #tpu.memory_space<smem>>, %arg11: memref<1x128xf32, #tpu.memory_space<vmem>>) attributes {dimension_semantics = [#tpu.dimension_semantics<parallel>], iteration_bounds = array<i64: 1>, scalar_prefetch = 0 : i64, scratch_operands = 0 : i64, tpu.core_type = #tpu.core_type<tc>, window_params = [{transform_indices = @transform_0, window_bounds = array<i64: 28, 128>}, {pipeline_mode = #tpu.pipeline_mode<synchronous>, transform_indices = @transform_1, window_bounds = array<i64: 27, 28>}, {pipeline_mode = #tpu.pipeline_mode<synchronous>, transform_indices = @transform_2, window_bounds = array<i64: 16, 1>}, {pipeline_mode = #tpu.pipeline_mode<synchronous>, transform_indices = @transform_3, window_bounds = array<i64: 1, 16>}, {pipeline_mode = #tpu.pipeline_mode<synchronous>, transform_indices = @transform_4, window_bounds = array<i64: 11, 1>}, {pipeline_mode = #tpu.pipeline_mode<synchronous>, transform_indices = @transform_5, window_bounds = array<i64: 11, 1>}, {pipeline_mode = #tpu.pipeline_mode<synchronous>, transform_indices = @transform_6, window_bounds = array<i64: 1, 11>}, {pipeline_mode = #tpu.pipeline_mode<synchronous>, transform_indices = @transform_7, window_bounds = array<i64: 28, 1>}, {transform_indices = @transform_8, window_bounds = array<i64: 1, 1>}, {transform_indices = @transform_9, window_bounds = array<i64: 1, 1>}, {transform_indices = @transform_10, window_bounds = array<i64: 1, 128>}]} {
    %c0 = arith.constant 0 : index
    %c0_0 = arith.constant 0 : index
    %0 = vector.load %arg1[%c0, %c0_0] : memref<28x128xbf16, #tpu.memory_space<vmem>>, vector<28x128xbf16>
    %c0_1 = arith.constant 0 : index
    %c0_2 = arith.constant 0 : index
    %1 = vector.load %arg2[%c0_1, %c0_2] : memref<27x28xbf16, #tpu.memory_space<vmem>>, vector<27x28xbf16>
    %cst = arith.constant dense<0.000000e+00> : vector<27x128xf32>
    %2 = tpu.matmul %1, %0, %cst {dimension_numbers = #tpu.dot_dimension_numbers<[1], [0], [0], [1], [0, 0, 1, 1], [], []>} : vector<27x28xbf16>, vector<28x128xbf16>, vector<27x128xf32> -> vector<27x128xf32>
    %3 = vector.extract_strided_slice %2 {offsets = [0, 0], sizes = [16, 128], strides = [1, 1]} : vector<27x128xf32> to vector<16x128xf32>
    %c0_3 = arith.constant 0 : index
    %c0_4 = arith.constant 0 : index
    %4 = vector.load %arg3[%c0_3, %c0_4] : memref<16x1xf32, #tpu.memory_space<vmem>>, vector<16x1xf32>
    %5 = vector.broadcast %4 : vector<16x1xf32> to vector<16x128xf32>
    %6 = arith.addf %3, %5 : vector<16x128xf32>
    %cst_5 = arith.constant 0.000000e+00 : f32
    %7 = vector.broadcast %cst_5 : f32 to vector<16x128xf32>
    %8 = arith.maximumf %6, %7 : vector<16x128xf32>
    %9 = vector.extract_strided_slice %2 {offsets = [16, 0], sizes = [11, 128], strides = [1, 1]} : vector<27x128xf32> to vector<11x128xf32>
    %c0_6 = arith.constant 0 : index
    %c0_7 = arith.constant 0 : index
    %10 = vector.load %arg4[%c0_6, %c0_7] : memref<1x16xf32, #tpu.memory_space<vmem>>, vector<1x16xf32>
    %cst_8 = arith.constant dense<0.000000e+00> : vector<1x128xf32>
    %11 = tpu.matmul %10, %8, %cst_8 {dimension_numbers = #tpu.dot_dimension_numbers<[1], [0], [0], [1], [0, 0, 1, 1], [], []>} : vector<1x16xf32>, vector<16x128xf32>, vector<1x128xf32> -> vector<1x128xf32>
    %c0_9 = arith.constant 0 : index
    %c0_10 = arith.constant 0 : index
    %12 = memref.load %arg9[%c0_9, %c0_10] : memref<1x1xf32, #tpu.memory_space<smem>>
    %13 = vector.broadcast %12 : f32 to vector<1x128xf32>
    %14 = arith.addf %11, %13 : vector<1x128xf32>
    %cst_11 = arith.constant 0.000000e+00 : f32
    %15 = vector.broadcast %cst_11 : f32 to vector<1x128xf32>
    %16 = arith.maximumf %14, %15 : vector<1x128xf32>
    %17 = arith.extf %0 : vector<28x128xbf16> to vector<28x128xf32>
    %18 = arith.mulf %17, %17 : vector<28x128xf32>
    %c0_12 = arith.constant 0 : index
    %c0_13 = arith.constant 0 : index
    %19 = vector.load %arg8[%c0_12, %c0_13] : memref<28x1xf32, #tpu.memory_space<vmem>>, vector<28x1xf32>
    %20 = vector.broadcast %19 : vector<28x1xf32> to vector<28x128xf32>
    %21 = arith.mulf %18, %20 : vector<28x128xf32>
    %22 = arith.mulf %16, %16 : vector<1x128xf32>
    %cst_14 = arith.constant dense<0.000000e+00> : vector<128xf32>
    %23 = vector.multi_reduction <add>, %21, %cst_14 [0] : vector<28x128xf32> to vector<128xf32>
    %24 = vector.shape_cast %23 : vector<128xf32> to vector<1x128xf32>
    %25 = arith.addf %22, %24 : vector<1x128xf32>
    %cst_15 = arith.constant 1.000000e-24 : f32
    %26 = vector.broadcast %cst_15 : f32 to vector<1x128xf32>
    %27 = arith.maximumf %25, %26 : vector<1x128xf32>
    %28 = math.rsqrt %27 : vector<1x128xf32>
    %c0_16 = arith.constant 0 : index
    %c0_17 = arith.constant 0 : index
    %29 = vector.load %arg5[%c0_16, %c0_17] : memref<11x1xf32, #tpu.memory_space<vmem>>, vector<11x1xf32>
    %30 = vector.broadcast %29 : vector<11x1xf32> to vector<11x128xf32>
    %31 = vector.broadcast %16 : vector<1x128xf32> to vector<11x128xf32>
    %32 = arith.mulf %30, %31 : vector<11x128xf32>
    %33 = arith.addf %32, %9 : vector<11x128xf32>
    %34 = vector.broadcast %28 : vector<1x128xf32> to vector<11x128xf32>
    %35 = arith.mulf %33, %34 : vector<11x128xf32>
    %c0_18 = arith.constant 0 : index
    %c0_19 = arith.constant 0 : index
    %36 = vector.load %arg6[%c0_18, %c0_19] : memref<11x1xf32, #tpu.memory_space<vmem>>, vector<11x1xf32>
    %37 = vector.broadcast %36 : vector<11x1xf32> to vector<11x128xf32>
    %38 = arith.addf %35, %37 : vector<11x128xf32>
    %cst_20 = arith.constant 0.000000e+00 : f32
    %39 = vector.broadcast %cst_20 : f32 to vector<11x128xf32>
    %40 = arith.maximumf %38, %39 : vector<11x128xf32>
    %c0_21 = arith.constant 0 : index
    %c0_22 = arith.constant 0 : index
    %41 = vector.load %arg7[%c0_21, %c0_22] : memref<1x11xf32, #tpu.memory_space<vmem>>, vector<1x11xf32>
    %cst_23 = arith.constant dense<0.000000e+00> : vector<1x128xf32>
    %42 = tpu.matmul %41, %40, %cst_23 {dimension_numbers = #tpu.dot_dimension_numbers<[1], [0], [0], [1], [0, 0, 1, 1], [], []>} : vector<1x11xf32>, vector<11x128xf32>, vector<1x128xf32> -> vector<1x128xf32>
    %c0_24 = arith.constant 0 : index
    %c0_25 = arith.constant 0 : index
    %43 = memref.load %arg10[%c0_24, %c0_25] : memref<1x1xf32, #tpu.memory_space<smem>>
    %44 = vector.broadcast %43 : f32 to vector<1x128xf32>
    %45 = arith.addf %42, %44 : vector<1x128xf32>
    %c0_26 = arith.constant 0 : index
    %c0_27 = arith.constant 0 : index
    %46 = vector.load %arg11[%c0_26, %c0_27] : memref<1x128xf32, #tpu.memory_space<vmem>>, vector<1x128xf32>
    tpu.vector_store %arg11[%c0_26, %c0_27], %45 {strides = array<i32>} : memref<1x128xf32, #tpu.memory_space<vmem>>, vector<1x128xf32>,
    return
  }
  func.func @transform_0(%arg0: i32) -> (i32, i32) {
    %c0_i32 = arith.constant 0 : i32
    %c0_i32_0 = arith.constant 0 : i32
    return %c0_i32, %arg0 : i32, i32
  }
  func.func @transform_1(%arg0: i32) -> (i32, i32) {
    %c0_i32 = arith.constant 0 : i32
    %c0_i32_0 = arith.constant 0 : i32
    %c0_i32_1 = arith.constant 0 : i32
    return %c0_i32, %c0_i32_0 : i32, i32
  }
  func.func @transform_2(%arg0: i32) -> (i32, i32) {
    %c0_i32 = arith.constant 0 : i32
    %c0_i32_0 = arith.constant 0 : i32
    %c0_i32_1 = arith.constant 0 : i32
    return %c0_i32, %c0_i32_0 : i32, i32
  }
  func.func @transform_3(%arg0: i32) -> (i32, i32) {
    %c0_i32 = arith.constant 0 : i32
    %c0_i32_0 = arith.constant 0 : i32
    %c0_i32_1 = arith.constant 0 : i32
    return %c0_i32, %c0_i32_0 : i32, i32
  }
  func.func @transform_4(%arg0: i32) -> (i32, i32) {
    %c0_i32 = arith.constant 0 : i32
    %c0_i32_0 = arith.constant 0 : i32
    %c0_i32_1 = arith.constant 0 : i32
    return %c0_i32, %c0_i32_0 : i32, i32
  }
  func.func @transform_5(%arg0: i32) -> (i32, i32) {
    %c0_i32 = arith.constant 0 : i32
    %c0_i32_0 = arith.constant 0 : i32
    %c0_i32_1 = arith.constant 0 : i32
    return %c0_i32, %c0_i32_0 : i32, i32
  }
  func.func @transform_6(%arg0: i32) -> (i32, i32) {
    %c0_i32 = arith.constant 0 : i32
    %c0_i32_0 = arith.constant 0 : i32
    %c0_i32_1 = arith.constant 0 : i32
    return %c0_i32, %c0_i32_0 : i32, i32
  }
  func.func @transform_7(%arg0: i32) -> (i32, i32) {
    %c0_i32 = arith.constant 0 : i32
    %c0_i32_0 = arith.constant 0 : i32
    %c0_i32_1 = arith.constant 0 : i32
    return %c0_i32, %c0_i32_0 : i32, i32
  }
  func.func @transform_8(%arg0: i32) -> (i32, i32) {
    %c0_i32 = arith.constant 0 : i32
    %c0_i32_0 = arith.constant 0 : i32
    %c0_i32_1 = arith.constant 0 : i32
    return %c0_i32, %c0_i32_0 : i32, i32
  }
  func.func @transform_9(%arg0: i32) -> (i32, i32) {
    %c0_i32 = arith.constant 0 : i32
    %c0_i32_0 = arith.constant 0 : i32
    %c0_i32_1 = arith.constant 0 : i32
    return %c0_i32, %c0_i32_0 : i32, i32
  }
  func.func @transform_10(%arg0: i32) -> (i32, i32) {
    %c0_i32 = arith.constant 0 : i32
    %c0_i32_0 = arith.constant 0 : i32
    return %c0_i32, %arg0 : i32, i32
  }
}

</mosaic_0001>

<llo_original>
// kernel: tpu_custom_call.1
$region0: #{tpu_custom_call.1}
  #allocation0 [shape = 'u32[]', space=smem, size = 0x4, offset = 0x4, fixed_abs, tag = 'smem constant byte address 0x4 - core index']
  #allocation1 [shape = 'u32[144,128]{1,0:T(1,128)}', space=vmem, size = 0x12000, scoped, tag = 'internal scratch']
  #allocation2 [shape = 'f32[1,1]{1,0:T(1,128)S(6)}', space=smem, size = 0x200, scoped, tag = 'scoped memory for tpu_custom_call.1']
  #allocation3 [shape = 'f32[1,1]{1,0:T(1,128)S(6)}', space=smem, size = 0x200, scoped, tag = 'scoped memory for tpu_custom_call.1']
  %s0 = inlined_call_operand.vmem [shape: bf16[28,128], index: 0, kind: input, shape index: {}]
  %s1 = inlined_call_operand.vmem [shape: bf16[27,28], index: 1, kind: input, shape index: {}]
  %s2 = inlined_call_operand.vmem [shape: f32[16,1], index: 2, kind: input, shape index: {}]
  %s3 = inlined_call_operand.vmem [shape: f32[1,16], index: 3, kind: input, shape index: {}]
  %s4 = inlined_call_operand.vmem [shape: f32[11,1], index: 4, kind: input, shape index: {}]
  %s5 = inlined_call_operand.vmem [shape: f32[11,1], index: 5, kind: input, shape index: {}]
  %s6 = inlined_call_operand.vmem [shape: f32[1,11], index: 6, kind: input, shape index: {}]
  %s7 = inlined_call_operand.vmem [shape: f32[28,1], index: 7, kind: input, shape index: {}]
  %s8 = inlined_call_operand.<no memory space> [shape: f32[1,1], index: 8, kind: input, shape index: {}]
  %s9 = inlined_call_operand.<no memory space> [shape: f32[1,1], index: 9, kind: input, shape index: {}]
  %s10 = inlined_call_operand.hbm [shape: f32[1,128], index: 10, kind: output, shape index: {}]
  %s11 = sld [smem:[#allocation0]]
  $region50: #{tpu_custom_call.1} parent=0
    _
  %s13 = ssub.s32 1, %s11
  %s14 = scalar_select 0, %s13, %s11
  %15 = sst [smem:[#allocation2]] %s8
  %16 = sst [smem:[#allocation3]] %s9
  $region1: #{tpu_custom_call.1} parent=0
    #allocation4 [shape = 'u8[512]{0}', space=vmem, size = 0x400, scoped, tag = 'output window, operand 0, single buffered']
    #allocation5 [shape = 's32[1]{0}', space=sflag, size = 0x4, scoped, tag = 'scoped memory for tpu_custom_call.1']
    %17 = vsyncpa [#allocation5], 0
    // Predicated region
    $region2: #{tpu_custom_call.1} parent=1 // pred_check
      _
    $region3: #{tpu_custom_call.1} parent=1 // pred_check_branch
      %19 = sbr.rel (0) target = $region5
    $region4: #{tpu_custom_call.1} parent=1 // pred_region
      _
    $region5: #{tpu_custom_call.1} parent=1 // pred_fallthru
      _
    // Predicated region
    $region6: #{tpu_custom_call.1} parent=1 // pred_check
      _
    $region7: #{tpu_custom_call.1} parent=1 // pred_check_branch
      %21 = sbr.rel (0) target = $region9
    $region8: #{tpu_custom_call.1} parent=1 // pred_region
      _
    $region9: #{tpu_custom_call.1} parent=1 // pred_fallthru
      _
    // Predicated region
    $region10: #{tpu_custom_call.1} parent=1 // pred_check
      _
    $region11: #{tpu_custom_call.1} parent=1 // pred_check_branch
      %23 = sbr.rel (0) target = $region13
    $region12: #{tpu_custom_call.1} parent=1 // pred_region
      _
    $region13: #{tpu_custom_call.1} parent=1 // pred_fallthru
      _
    // Predicated region
    $region14: #{tpu_custom_call.1} parent=1 // pred_check
      _
    $region15: #{tpu_custom_call.1} parent=1 // pred_check_branch
      %25 = sbr.rel (0) target = $region17
    $region16: #{tpu_custom_call.1} parent=1 // pred_region
      _
    $region17: #{tpu_custom_call.1} parent=1 // pred_fallthru
      _
    // Predicated region
    $region18: #{tpu_custom_call.1} parent=1 // pred_check
      _
    $region19: #{tpu_custom_call.1} parent=1 // pred_check_branch
      %27 = sbr.rel (0) target = $region21
    $region20: #{tpu_custom_call.1} parent=1 // pred_region
      _
    $region21: #{tpu_custom_call.1} parent=1 // pred_fallthru
      _
    // Predicated region
    $region22: #{tpu_custom_call.1} parent=1 // pred_check
      _
    $region23: #{tpu_custom_call.1} parent=1 // pred_check_branch
      %29 = sbr.rel (0) target = $region25
    $region24: #{tpu_custom_call.1} parent=1 // pred_region
      _
    $region25: #{tpu_custom_call.1} parent=1 // pred_fallthru
      _
    // Predicated region
    $region26: #{tpu_custom_call.1} parent=1 // pred_check
      _
    $region27: #{tpu_custom_call.1} parent=1 // pred_check_branch
      %31 = sbr.rel (0) target = $region29
    $region28: #{tpu_custom_call.1} parent=1 // pred_region
      _
    $region29: #{tpu_custom_call.1} parent=1 // pred_fallthru
      _
    // Predicated region
    $region30: #{tpu_custom_call.1} parent=1 // pred_check
      _
    $region31: #{tpu_custom_call.1} parent=1 // pred_check_branch
      %33 = sbr.rel (0) target = $region33
    $region32: #{tpu_custom_call.1} parent=1 // pred_region
      _
    $region33: #{tpu_custom_call.1} parent=1 // pred_fallthru
      _
    // Predicated region
    $region34: #{tpu_custom_call.1} parent=1 // pred_check
      _
    $region35: #{tpu_custom_call.1} parent=1 // pred_check_branch
      %35 = sbr.rel (0) target = $region37
    $region36: #{tpu_custom_call.1} parent=1 // pred_region
      _
    $region37: #{tpu_custom_call.1} parent=1 // pred_fallthru
      _
    // Predicated region
    $region38: #{tpu_custom_call.1} parent=1 // pred_check
      _
    $region39: #{tpu_custom_call.1} parent=1 // pred_check_branch
      %37 = sbr.rel (0) target = $region41
    $region40: #{tpu_custom_call.1} parent=1 // pred_region
      _
    $region41: #{tpu_custom_call.1} parent=1 // pred_fallthru
      _
    %v39 = vld [vmem:[%s0] sm:$0xf]
    %v40 = vld [vmem:[%s0 + $0x4] sm:$0xf]
    %v41 = vld [vmem:[%s0 + $0x8] sm:$0xf]
    %v42 = vld [vmem:[%s0 + $0xc] sm:$0x3]
    %v43 = vld [vmem:[%s1] sm:$0xf]
    %v44 = vld [vmem:[%s1 + $0x4] sm:$0xf]
    %v45 = vld [vmem:[%s1 + $0x8] sm:$0xf]
    %v46 = vld [vmem:[%s1 + $0xc] sm:$0x3]
    %v51 = vunpack.c.l.b16 %v43
    %v52 = vunpack.c.l.b16 %v44
    %v53 = vunpack.c.l.b16 %v45
    %v54 = vunpack.c.l.b16 %v46
    %v55 = vpack.c.b16 %v52, %v51
    %v56 = vpack.c.b16 %v54, %v53
    %v61 = vunpack.c.l.b16 %v39
    %v62 = vunpack.c.l.b16 %v40
    %v63 = vunpack.c.l.b16 %v41
    %v64 = vunpack.c.l.b16 %v42
    %v65 = vpack.c.b16 %v62, %v61
    %v66 = vpack.c.b16 %v64, %v63
    %vm68 = vcmask 228352
    %v70 = vsel %vm68, %v55, 0
    %v73 = vsel %vm68, %v56, 0
    %vm75 = vcmask 1045504
    %v77 = vsel %vm75, %v66, 0
    %79 = vmatprep.subr.bf16.mxu0 0
    %80 = vmatpush1.bf16.msra.mxu0 %v65
    %81 = vmatprep.subr.bf16.mxu0 0
    %82 = vmatpush1.bf16.msra.mxu0 %v77
    %83 = vmatprep.subr.bf16.mxu0 0
    %84 = vmatpush1.bf16.msra.mxu0 0
    %85 = vmatprep.subr.bf16.mxu0 0
    %86 = vmatpush1.bf16.msra.mxu0 0
    %87 = vmatprep.subr.bf16.mxu0 0
    %88 = vmatpush1.bf16.msra.mxu0 0
    %89 = vmatprep.subr.bf16.mxu0 0
    %90 = vmatpush1.bf16.msra.mxu0 0
    %91 = vmatprep.subr.bf16.mxu0 0
    %92 = vmatpush1.bf16.msra.mxu0 0
    %93 = vmatprep.subr.bf16.mxu0 0
    %94 = vmatpush1.bf16.msra.mxu0 0
    %95 = vmatprep.subr.bf16.mxu0 0
    %96 = vmatpush1.bf16.msra.mxu0 0
    %97 = vmatprep.subr.bf16.mxu0 0
    %98 = vmatpush1.bf16.msra.mxu0 0
    %99 = vmatprep.subr.bf16.mxu0 0
    %100 = vmatpush1.bf16.msra.mxu0 0
    %101 = vmatprep.subr.bf16.mxu0 0
    %102 = vmatpush1.bf16.msra.mxu0 0
    %103 = vmatprep.subr.bf16.mxu0 0
    %104 = vmatpush1.bf16.msra.mxu0 0
    %105 = vmatprep.subr.bf16.mxu0 0
    %106 = vmatpush1.bf16.msra.mxu0 0
    %107 = vmatprep.subr.bf16.mxu0 0
    %108 = vmatpush1.bf16.msra.mxu0 0
    %109 = vmatprep.subr.bf16.mxu0 0
    %110 = vmatpush1.bf16.msra.mxu0 0
    %111 = vmatprep.mubr.bf16.mxu0 0
    %112 = vmatmul.mubr.bf16.gmra.mrb[0].mxu0 %v70
    %v113 = vpop.f32.mrb[0].mxu0
    %v114 = vadd.f32 0.0, %v113
    %v115 = vpop.f32.mrb[0].mxu0
    %v116 = vpop.f32.mrb[0].mxu0
    %v117 = vadd.f32 0.0, %v116
    %v118 = vpop.f32.mrb[0].mxu0
    %119 = vmatprep.mubr.bf16.mxu0 0
    %120 = vmatmul.mubr.bf16.gmra.mrb[0].mxu0 %v73
    %v121 = vpop.f32.mrb[0].mxu0
    %v122 = vadd.f32 0.0, %v121
    %v123 = vpop.f32.mrb[0].mxu0
    %v124 = vpop.f32.mrb[0].mxu0
    %v125 = vadd.f32 0.0, %v124
    %v126 = vpop.f32.mrb[0].mxu0
    %127 = vdwg.mxu0
    %v128 = vld [vmem:[%s2] sm:$0xff]
    %v129 = vld [vmem:[%s2 + $0x8] sm:$0xff]
    %131 = vset.pattern.permute.xlu0 0
    %132 = vperm.xlu0 %131, %v128
    %v133 = vpop.permute.xlu0 %132
    %136 = vset.pattern.permute.xlu0 0
    %137 = vperm.xlu0 %136, %v129
    %v138 = vpop.permute.xlu0 %137
    %v140 = vadd.f32 %v114, %v133
    %v141 = vadd.f32 %v117, %v138
    %v142 = vmax.f32 %v140, 0.0
    %v143 = vmax.f32 %v141, 0.0
    %v144 = vld [vmem:[%s3] sm:$0x1]
    %s145 = sld [smem:[#allocation2]]
    %v146 = vstv %s145
    %vm147 = vcmask 130048
    %v149 = vsel %vm147, %v144, 0
    %151 = vmatprep.subr.mxu0 0.0
    %152 = vmatpush1.msra.mxu0 %v142
    %153 = vmatprep.subr.mxu0 0.0
    %154 = vmatpush1.msra.mxu0 %v143
    %155 = vmatprep.subr.mxu0 0.0
    %156 = vmatpush1.msra.mxu0 0.0
    %157 = vmatprep.subr.mxu0 0.0
    %158 = vmatpush1.msra.mxu0 0.0
    %159 = vmatprep.subr.mxu0 0.0
    %160 = vmatpush1.msra.mxu0 0.0
    %161 = vmatprep.subr.mxu0 0.0
    %162 = vmatpush1.msra.mxu0 0.0
    %163 = vmatprep.subr.mxu0 0.0
    %164 = vmatpush1.msra.mxu0 0.0
    %165 = vmatprep.subr.mxu0 0.0
    %166 = vmatpush1.msra.mxu0 0.0
    %167 = vmatprep.subr.mxu0 0.0
    %168 = vmatpush1.msra.mxu0 0.0
    %169 = vmatprep.subr.mxu0 0.0
    %170 = vmatpush1.msra.mxu0 0.0
    %171 = vmatprep.subr.mxu0 0.0
    %172 = vmatpush1.msra.mxu0 0.0
    %173 = vmatprep.subr.mxu0 0.0
    %174 = vmatpush1.msra.mxu0 0.0
    %175 = vmatprep.subr.mxu0 0.0
    %176 = vmatpush1.msra.mxu0 0.0
    %177 = vmatprep.subr.mxu0 0.0
    %178 = vmatpush1.msra.mxu0 0.0
    %179 = vmatprep.subr.mxu0 0.0
    %180 = vmatpush1.msra.mxu0 0.0
    %181 = vmatprep.subr.mxu0 0.0
    %182 = vmatpush1.msra.mxu0 0.0
    %183 = vmatprep.subr.mxu0 0.0
    %184 = vmatpush1.msra.mxu0 0.0
    %185 = vmatprep.subr.mxu0 0.0
    %186 = vmatpush1.msra.mxu0 0.0
    %187 = vmatprep.subr.mxu0 0.0
    %188 = vmatpush1.msra.mxu0 0.0
    %189 = vmatprep.subr.mxu0 0.0
    %190 = vmatpush1.msra.mxu0 0.0
    %191 = vmatprep.subr.mxu0 0.0
    %192 = vmatpush1.msra.mxu0 0.0
    %193 = vmatprep.subr.mxu0 0.0
    %194 = vmatpush1.msra.mxu0 0.0
    %195 = vmatprep.subr.mxu0 0.0
    %196 = vmatpush1.msra.mxu0 0.0
    %197 = vmatprep.subr.mxu0 0.0
    %198 = vmatpush1.msra.mxu0 0.0
    %199 = vmatprep.subr.mxu0 0.0
    %200 = vmatpush1.msra.mxu0 0.0
    %201 = vmatprep.subr.mxu0 0.0
    %202 = vmatpush1.msra.mxu0 0.0
    %203 = vmatprep.subr.mxu0 0.0
    %204 = vmatpush1.msra.mxu0 0.0
    %205 = vmatprep.subr.mxu0 0.0
    %206 = vmatpush1.msra.mxu0 0.0
    %207 = vmatprep.subr.mxu0 0.0
    %208 = vmatpush1.msra.mxu0 0.0
    %209 = vmatprep.subr.mxu0 0.0
    %210 = vmatpush1.msra.mxu0 0.0
    %211 = vmatprep.subr.mxu0 0.0
    %212 = vmatpush1.msra.mxu0 0.0
    %213 = vmatprep.subr.mxu0 0.0
    %214 = vmatpush1.msra.mxu0 0.0
    %215 = vmatprep.mubr.f32.mxu0 0.0
    %216 = vmatmul.mubr.f32.gmra.mrb[0].mxu0 %v149
    %v217 = vpop.f32.mrb[0].mxu0
    %v218 = vadd.f32 %v146, %v217
    %v219 = vpop.f32.mrb[0].mxu0
    %220 = vdwg.mxu0
    %v221 = vmax.f32 %v218, 0.0
    %v222 = vunpack.c.l.bf16 %v39
    %v223 = vunpack.c.l.bf16 %v40
    %v224 = vunpack.c.l.bf16 %v41
    %v225 = vunpack.c.l.bf16 %v42
    %v226 = vmul.f32 %v222, %v222
    %v227 = vmul.f32 %v223, %v223
    %v228 = vmul.f32 %v224, %v224
    %v229 = vmul.f32 %v225, %v225
    %v230 = vld [vmem:[%s7] sm:$0xff]
    %v231 = vld [vmem:[%s7 + $0x8] sm:$0xff]
    %v232 = vld [vmem:[%s7 + $0x10] sm:$0xff]
    %v233 = vld [vmem:[%s7 + $0x18] sm:$0xf]
    %235 = vset.pattern.permute.xlu0 0
    %236 = vperm.xlu0 %235, %v230
    %v237 = vpop.permute.xlu0 %236
    %240 = vset.pattern.permute.xlu0 0
    %241 = vperm.xlu0 %240, %v231
    %v242 = vpop.permute.xlu0 %241
    %245 = vset.pattern.permute.xlu0 0
    %246 = vperm.xlu0 %245, %v232
    %v247 = vpop.permute.xlu0 %246
    %250 = vset.pattern.permute.xlu0 0
    %251 = vperm.xlu0 %250, %v233
    %v252 = vpop.permute.xlu0 %251
    %v254 = vmul.f32 %v226, %v237
    %v255 = vmul.f32 %v227, %v242
    %v256 = vmul.f32 %v228, %v247
    %v257 = vmul.f32 %v229, %v252
    %v258 = vmul.f32 %v221, %v221
    %v259 = vadd.f32 %v254, %v255
    %v260 = vadd.f32 %v259, %v256
    %vm261 = vcmask 1043456
    %v262 = vsel %vm261, %v257, 0.0
    %v263 = vadd.f32 %v260, %v262
    %v264 = vrot.slane %v263, 4
    %v265 = vadd.f32 %v263, %v264
    %v266 = vrot.slane %v265, 2
    %v267 = vadd.f32 %v265, %v266
    %v268 = vrot.slane %v267, 1
    %v269 = vadd.f32 %v267, %v268
    %v270 = vadd.f32 %v258, %v269
    %v271 = vmax.f32 %v270, 1e-24
    %v272 = vrsqrt.pop %v271
    %v273 = vld [vmem:[%s4] sm:$0xff]
    %v274 = vld [vmem:[%s4 + $0x8] sm:$0x7]
    %276 = vset.pattern.permute.xlu0 0
    %277 = vperm.xlu0 %276, %v273
    %v278 = vpop.permute.xlu0 %277
    %281 = vset.pattern.permute.xlu0 0
    %282 = vperm.xlu0 %281, %v274
    %v283 = vpop.permute.xlu0 %282
    %v285 = vlaneseq
    %v286 = vshrl.u32 %v285, 7
    %v287 = vsub.s32 0, %v286
    %v288 = vrot.slane %v221, %v287
    %v289 = vmul.f32 %v278, %v288
    %v290 = vmul.f32 %v283, %v288
    %v291 = vadd.f32 %v289, %v122
    %v292 = vadd.f32 %v290, %v125
    %v293 = vlaneseq
    %v294 = vshrl.u32 %v293, 7
    %v295 = vsub.s32 0, %v294
    %v296 = vrot.slane %v272, %v295
    %v297 = vmul.f32 %v291, %v296
    %v298 = vmul.f32 %v292, %v296
    %v299 = vld [vmem:[%s5] sm:$0xff]
    %v300 = vld [vmem:[%s5 + $0x8] sm:$0x7]
    %302 = vset.pattern.permute.xlu0 0
    %303 = vperm.xlu0 %302, %v299
    %v304 = vpop.permute.xlu0 %303
    %307 = vset.pattern.permute.xlu0 0
    %308 = vperm.xlu0 %307, %v300
    %v309 = vpop.permute.xlu0 %308
    %v311 = vadd.f32 %v297, %v304
    %v312 = vadd.f32 %v298, %v309
    %v313 = vmax.f32 %v311, 0.0
    %v314 = vmax.f32 %v312, 0.0
    %v315 = vld [vmem:[%s6] sm:$0x1]
    %s316 = sld [smem:[#allocation3]]
    %v317 = vstv %s316
    %vm318 = vcmask 89088
    %v320 = vsel %vm318, %v315, 0
    %vm322 = vcmask 1042432
    %v324 = vsel %vm322, %v314, 0
    %326 = vmatprep.subr.mxu0 0.0
    %327 = vmatpush1.msra.mxu0 %v313
    %328 = vmatprep.subr.mxu0 0.0
    %329 = vmatpush1.msra.mxu0 %v324
    %330 = vmatprep.subr.mxu0 0.0
    %331 = vmatpush1.msra.mxu0 0.0
    %332 = vmatprep.subr.mxu0 0.0
    %333 = vmatpush1.msra.mxu0 0.0
    %334 = vmatprep.subr.mxu0 0.0
    %335 = vmatpush1.msra.mxu0 0.0
    %336 = vmatprep.subr.mxu0 0.0
    %337 = vmatpush1.msra.mxu0 0.0
    %338 = vmatprep.subr.mxu0 0.0
    %339 = vmatpush1.msra.mxu0 0.0
    %340 = vmatprep.subr.mxu0 0.0
    %341 = vmatpush1.msra.mxu0 0.0
    %342 = vmatprep.subr.mxu0 0.0
    %343 = vmatpush1.msra.mxu0 0.0
    %344 = vmatprep.subr.mxu0 0.0
    %345 = vmatpush1.msra.mxu0 0.0
    %346 = vmatprep.subr.mxu0 0.0
    %347 = vmatpush1.msra.mxu0 0.0
    %348 = vmatprep.subr.mxu0 0.0
    %349 = vmatpush1.msra.mxu0 0.0
    %350 = vmatprep.subr.mxu0 0.0
    %351 = vmatpush1.msra.mxu0 0.0
    %352 = vmatprep.subr.mxu0 0.0
    %353 = vmatpush1.msra.mxu0 0.0
    %354 = vmatprep.subr.mxu0 0.0
    %355 = vmatpush1.msra.mxu0 0.0
    %356 = vmatprep.subr.mxu0 0.0
    %357 = vmatpush1.msra.mxu0 0.0
    %358 = vmatprep.subr.mxu0 0.0
    %359 = vmatpush1.msra.mxu0 0.0
    %360 = vmatprep.subr.mxu0 0.0
    %361 = vmatpush1.msra.mxu0 0.0
    %362 = vmatprep.subr.mxu0 0.0
    %363 = vmatpush1.msra.mxu0 0.0
    %364 = vmatprep.subr.mxu0 0.0
    %365 = vmatpush1.msra.mxu0 0.0
    %366 = vmatprep.subr.mxu0 0.0
    %367 = vmatpush1.msra.mxu0 0.0
    %368 = vmatprep.subr.mxu0 0.0
    %369 = vmatpush1.msra.mxu0 0.0
    %370 = vmatprep.subr.mxu0 0.0
    %371 = vmatpush1.msra.mxu0 0.0
    %372 = vmatprep.subr.mxu0 0.0
    %373 = vmatpush1.msra.mxu0 0.0
    %374 = vmatprep.subr.mxu0 0.0
    %375 = vmatpush1.msra.mxu0 0.0
    %376 = vmatprep.subr.mxu0 0.0
    %377 = vmatpush1.msra.mxu0 0.0
    %378 = vmatprep.subr.mxu0 0.0
    %379 = vmatpush1.msra.mxu0 0.0
    %380 = vmatprep.subr.mxu0 0.0
    %381 = vmatpush1.msra.mxu0 0.0
    %382 = vmatprep.subr.mxu0 0.0
    %383 = vmatpush1.msra.mxu0 0.0
    %384 = vmatprep.subr.mxu0 0.0
    %385 = vmatpush1.msra.mxu0 0.0
    %386 = vmatprep.subr.mxu0 0.0
    %387 = vmatpush1.msra.mxu0 0.0
    %388 = vmatprep.subr.mxu0 0.0
    %389 = vmatpush1.msra.mxu0 0.0
    %390 = vmatprep.mubr.f32.mxu0 0.0
    %391 = vmatmul.mubr.f32.gmra.mrb[0].mxu0 %v320
    %v392 = vpop.f32.mrb[0].mxu0
    %v393 = vadd.f32 %v317, %v392
    %v394 = vpop.f32.mrb[0].mxu0
    %395 = vdwg.mxu0
    %396 = vst [vmem:[#allocation4] sm:$0x1] %v393
    // Predicated region
    $region42: #{tpu_custom_call.1} parent=1 // pred_check
      _
    $region43: #{tpu_custom_call.1} parent=1 // pred_check_branch
      %398 = sbr.rel (0) target = $region45
    $region44: #{tpu_custom_call.1} parent=1 // pred_region
      %s400 = ssub.s32 16, 16
      %401 = vsyncadd [#allocation5], %s400
      %s403 = sshll.u32 [#allocation4], 4
      %s404 = int_to_ptr.vmem [resolvable:$true] %s403
      %406 = dma.vmem_to_hbm [thread:$0]  %s404, 16, %s10, [#allocation5]
    $region45: #{tpu_custom_call.1} parent=1 // pred_fallthru
      _
    // Predicated region
    $region46: #{tpu_custom_call.1} parent=1 // pred_check
      _
    $region47: #{tpu_custom_call.1} parent=1 // pred_check_branch
      %408 = sbr.rel (0) target = $region49
    $region48: #{tpu_custom_call.1} parent=1 // pred_region
      %409 = dma.done [#allocation5], 16
    $region49: #{tpu_custom_call.1} parent=1 // pred_fallthru
      _
    %410 = vsyncpa [#allocation5], 1

</llo_original>
